<compile_context>
chip_gen: v7x
topology: tpu7x:2x2x1
jax: 0.10.0
libtpu: 0.0.40
codegen_flags: <defaults>
</compile_context>

<pallas_src>
import jax
import jax.numpy as jnp
from jax.experimental import pallas as pl
from jax.experimental.pallas import tpu as pltpu


# ----------------------------- kernel ---------------------------------------
def _mlp_kernel(x_ref, w_ref, b_ref, o_ref, acc_ref):
    # x_ref:   (tm, tk)  input tile (f32 or bf16; cast to the weight dtype here
    #                     if the wrapper decided not to pre-cast)
    # w_ref:   (tk, tn)  weight tile, already [in, out] -> pure MXU accumulate
    # b_ref:   (1, tn)   f32 bias
    # o_ref:   (tm, tn)  output tile
    # acc_ref: (tm, tn)  f32 accumulator, resident across the K grid axis
    k = pl.program_id(2)

    @pl.when(k == 0)
    def _():
        acc_ref[...] = jnp.zeros_like(acc_ref)

    x = x_ref[...]
    if x.dtype != w_ref.dtype:                 # trace-time branch, free if equal
        x = x.astype(w_ref.dtype)
    acc_ref[...] += jnp.dot(x, w_ref[...], preferred_element_type=jnp.float32)

    @pl.when(k == pl.num_programs(2) - 1)
    def _():
        y = acc_ref[...] + b_ref[...]          # f32 bias add
        o_ref[...] = jnp.tanh(y).astype(o_ref.dtype)


# ----------------------------- helpers ---------------------------------------
def _round_up(x, m):
    return ((x + m - 1) // m) * m


def _vmem_limit_bytes():
    """~48 MiB on v7x (64 MiB/TC), ~100 MiB on v5e/v6e (128 MiB physical)."""
    try:
        cap = int(pltpu.get_tpu_info().vmem_capacity_bytes)
        return max(32 * 1024 * 1024, min(cap - 16 * 1024 * 1024, 100 * 1024 * 1024))
    except Exception:
        return 48 * 1024 * 1024


def prepare_mlp_params(weight, bias, *, matmul_dtype=jnp.bfloat16):
    """One-time parameter prep (call OUTSIDE the hot path):
    PyTorch nn.Linear weight [out, in] -> [in, out] in matmul_dtype,
    bias -> f32 row vector."""
    w_t = jnp.asarray(weight).T.astype(matmul_dtype)          # [K, N]
    b2d = jnp.asarray(bias).astype(jnp.float32).reshape(1, -1)
    return w_t, b2d


# ----------------------------- wrapper ----------------------------------------
def mlp_layer_prepared(features, w_t, b2d, *, tm=512, tn=512, tk=1024,
                       out_dtype=None):
    """features: [B, K]; w_t: pre-transposed weight [K, N]; b2d: [1, N]."""
    B, K = features.shape
    K_w, N = w_t.shape
    assert K == K_w, "weight in_features must match features"
    assert b2d.shape == (1, N)
    out_dtype = out_dtype or features.dtype

    # Tile selection: never fall back to a whole (possibly huge) axis; instead
    # pad each dim up to an (8,128)-aligned multiple of its tile.
    tile_m = min(tm, _round_up(B, 8))
    tile_n = min(tn, _round_up(N, 128))
    tile_k = min(tk, _round_up(K, 128))
    Bp = _round_up(B, tile_m)
    Np = _round_up(N, tile_n)
    Kp = _round_up(K, tile_k)

    # v7x has 2 TensorCores: if the whole output is a single block but N is
    # wide enough, split N so both cores get work under "parallel" semantics.
    if (Bp // tile_m) * (Np // tile_n) == 1 and tile_n % 256 == 0:
        tile_n //= 2

    grid = (Bp // tile_m, Np // tile_n, Kp // tile_k)
    grid_n = grid[1]

    # Pre-cast x only when the grid re-reads it enough times to amortize the
    # extra HBM pass; otherwise the kernel casts the tile on the VPU.
    x = features
    if x.dtype != w_t.dtype and grid_n > 3:
        x = x.astype(w_t.dtype)

    # Zero-padding is neutral for the matmul; padded rows/cols are sliced off.
    # TODO(synk): for a fixed model, pre-pad the weight/bias once at init too.
    if (Bp, Kp) != (B, K):
        x = jnp.pad(x, ((0, Bp - B), (0, Kp - K)))
    w = w_t if (Kp, Np) == (K, N) else jnp.pad(w_t, ((0, Kp - K), (0, Np - N)))
    b = b2d if Np == N else jnp.pad(b2d, ((0, 0), (0, Np - N)))

    bytes_accessed = (x.size * x.dtype.itemsize + w.size * w.dtype.itemsize
                      + b.size * 4 + Bp * Np * jnp.dtype(out_dtype).itemsize)

    out = pl.pallas_call(
        _mlp_kernel,
        out_shape=jax.ShapeDtypeStruct((Bp, Np), out_dtype),
        grid_spec=pltpu.PrefetchScalarGridSpec(
            num_scalar_prefetch=0,
            grid=grid,
            in_specs=[
                pl.BlockSpec((tile_m, tile_k), lambda i, j, k: (i, k)),  # x
                pl.BlockSpec((tile_k, tile_n), lambda i, j, k: (k, j)),  # W^T
                pl.BlockSpec((1, tile_n), lambda i, j, k: (0, j)),       # bias
            ],
            out_specs=pl.BlockSpec((tile_m, tile_n), lambda i, j, k: (i, j)),
            scratch_shapes=[pltpu.VMEM((tile_m, tile_n), jnp.float32)],
        ),
        compiler_params=pltpu.CompilerParams(
            dimension_semantics=("parallel", "parallel", "arbitrary"),
            vmem_limit_bytes=_vmem_limit_bytes(),
        ),
        cost_estimate=pl.CostEstimate(
            flops=2 * Bp * Np * Kp,
            transcendentals=Bp * Np,
            bytes_accessed=int(bytes_accessed),
        ),
    )(x, w, b)

    if (Bp, Np) != (B, N):
        out = out[:B, :N]
    return out


def mlp_layer(features, weight, bias, **kw):
    """Convenience wrapper taking the PyTorch [out, in] weight layout.
    For repeated calls, call prepare_mlp_params once and reuse the result."""
    w_t, b2d = prepare_mlp_params(weight, bias)
    return mlp_layer_prepared(features, w_t, b2d, **kw)


def mlp_layer_ref(features, weight, bias):
    return jnp.tanh(features @ weight.T + bias)


# ----------------------------- self-test ---------------------------------------
if __name__ == "__main__":
    key = jax.random.PRNGKey(0)

    # --- small CLS-head shape consistent with the module --------------------
    batch, hidden = 8, 32
    k1, k2, k3 = jax.random.split(key, 3)
    features = jax.random.normal(k1, (batch, hidden), dtype=jnp.float32)
    weight = jax.random.normal(k2, (hidden, hidden), dtype=jnp.float32) * 0.05
    bias = jax.random.normal(k3, (hidden,), dtype=jnp.float32) * 0.05

    w_t, b2d = prepare_mlp_params(weight, bias)          # one-time prep
    out = jax.block_until_ready(mlp_layer_prepared(features, w_t, b2d))
    ref = mlp_layer_ref(features, weight, bias)
    assert out.shape == (batch, hidden)
    # bf16 MXU operands -> bf16-appropriate tolerance
    assert jnp.allclose(out, ref, atol=2e-2, rtol=2e-2), float(
        jnp.max(jnp.abs(out - ref)))

    # --- larger, non-divisible shape: exercises padding + K accumulation ----
    b2, h2 = 96, 320
    k4, k5, k6 = jax.random.split(jax.random.PRNGKey(1), 3)
    f2 = jax.random.normal(k4, (b2, h2), dtype=jnp.float32)
    w2 = jax.random.normal(k5, (h2, h2), dtype=jnp.float32) * 0.05
    bb2 = jax.random.normal(k6, (h2,), dtype=jnp.float32) * 0.05

    out2 = jax.block_until_ready(
        mlp_layer(f2, w2, bb2, tm=128, tn=128, tk=128))  # grid (1, 3, 3)
    ref2 = mlp_layer_ref(f2, w2, bb2)
    assert out2.shape == (b2, h2)
    assert jnp.allclose(out2, ref2, atol=2e-2, rtol=2e-2), float(
        jnp.max(jnp.abs(out2 - ref2)))

    print("KERNEL_OK")
</pallas_src>

<mosaic_0001>
module attributes {stable_mosaic.version = 11 : i64} {
  func.func @_mlp_kernel(%arg0: i32, %arg1: i32, %arg2: i32, %arg3: memref<8x128xf32, #tpu.memory_space<vmem>>, %arg4: memref<128x128xbf16, #tpu.memory_space<vmem>>, %arg5: memref<1x128xf32, #tpu.memory_space<vmem>>, %arg6: memref<8x128xf32, #tpu.memory_space<vmem>>, %arg7: memref<8x128xf32, #tpu.memory_space<vmem>>) attributes {dimension_semantics = [#tpu.dimension_semantics<parallel>, #tpu.dimension_semantics<parallel>, #tpu.dimension_semantics<arbitrary>], iteration_bounds = array<i64: 1, 1, 1>, scalar_prefetch = 0 : i64, scratch_operands = 1 : i64, tpu.core_type = #tpu.core_type<tc>, window_params = [{transform_indices = @transform_0, window_bounds = array<i64: 8, 128>}, {transform_indices = @transform_1, window_bounds = array<i64: 128, 128>}, {transform_indices = @transform_2, window_bounds = array<i64: 1, 128>}, {transform_indices = @transform_3, window_bounds = array<i64: 8, 128>}]} {
    %c0_i32 = arith.constant 0 : i32
    %0 = arith.cmpi eq, %arg2, %c0_i32 : i32
    %1 = arith.extui %0 : i1 to i32
    %c0_i32_0 = arith.constant 0 : i32
    %2 = arith.cmpi ne, %1, %c0_i32_0 : i32
    scf.if %2 {
      %cst_10 = arith.constant 0.000000e+00 : f32
      %13 = vector.broadcast %cst_10 : f32 to vector<8x128xf32>
      %c0_11 = arith.constant 0 : index
      %c0_12 = arith.constant 0 : index
      %14 = vector.load %arg7[%c0_11, %c0_12] : memref<8x128xf32, #tpu.memory_space<vmem>>, vector<8x128xf32>
      tpu.vector_store %arg7[%c0_11, %c0_12], %13 {strides = array<i32>} : memref<8x128xf32, #tpu.memory_space<vmem>>, vector<8x128xf32>,
    } else {
    }
    %c0 = arith.constant 0 : index
    %c0_1 = arith.constant 0 : index
    %3 = vector.load %arg3[%c0, %c0_1] : memref<8x128xf32, #tpu.memory_space<vmem>>, vector<8x128xf32>
    %4 = arith.truncf %3 : vector<8x128xf32> to vector<8x128xbf16>
    %c0_2 = arith.constant 0 : index
    %c0_3 = arith.constant 0 : index
    %5 = vector.load %arg7[%c0_2, %c0_3] : memref<8x128xf32, #tpu.memory_space<vmem>>, vector<8x128xf32>
    %c0_4 = arith.constant 0 : index
    %c0_5 = arith.constant 0 : index
    %6 = vector.load %arg4[%c0_4, %c0_5] : memref<128x128xbf16, #tpu.memory_space<vmem>>, vector<128x128xbf16>
    %cst = arith.constant dense<0.000000e+00> : vector<8x128xf32>
    %7 = tpu.matmul %4, %6, %cst {dimension_numbers = #tpu.dot_dimension_numbers<[1], [0], [0], [1], [0, 0, 1, 1], [], []>} : vector<8x128xbf16>, vector<128x128xbf16>, vector<8x128xf32> -> vector<8x128xf32>
    %8 = arith.addf %5, %7 : vector<8x128xf32>
    %c0_6 = arith.constant 0 : index
    %c0_7 = arith.constant 0 : index
    %9 = vector.load %arg7[%c0_6, %c0_7] : memref<8x128xf32, #tpu.memory_space<vmem>>, vector<8x128xf32>
    tpu.vector_store %arg7[%c0_6, %c0_7], %8 {strides = array<i32>} : memref<8x128xf32, #tpu.memory_space<vmem>>, vector<8x128xf32>,
    %c0_i32_8 = arith.constant 0 : i32
    %10 = arith.cmpi eq, %arg2, %c0_i32_8 : i32
    %11 = arith.extui %10 : i1 to i32
    %c0_i32_9 = arith.constant 0 : i32
    %12 = arith.cmpi ne, %11, %c0_i32_9 : i32
    scf.if %12 {
      %c0_10 = arith.constant 0 : index
      %c0_11 = arith.constant 0 : index
      %13 = vector.load %arg7[%c0_10, %c0_11] : memref<8x128xf32, #tpu.memory_space<vmem>>, vector<8x128xf32>
      %c0_12 = arith.constant 0 : index
      %c0_13 = arith.constant 0 : index
      %14 = vector.load %arg5[%c0_12, %c0_13] : memref<1x128xf32, #tpu.memory_space<vmem>>, vector<1x128xf32>
      %15 = vector.broadcast %14 : vector<1x128xf32> to vector<8x128xf32>
      %16 = arith.addf %13, %15 : vector<8x128xf32>
      %17 = math.tanh %16 : vector<8x128xf32>
      %c0_14 = arith.constant 0 : index
      %c0_15 = arith.constant 0 : index
      %18 = vector.load %arg6[%c0_14, %c0_15] : memref<8x128xf32, #tpu.memory_space<vmem>>, vector<8x128xf32>
      tpu.vector_store %arg6[%c0_14, %c0_15], %17 {strides = array<i32>} : memref<8x128xf32, #tpu.memory_space<vmem>>, vector<8x128xf32>,
    } else {
    }
    return
  }
  func.func @transform_0(%arg0: i32, %arg1: i32, %arg2: i32) -> (i32, i32) {
    %c0_i32 = arith.constant 0 : i32
    return %arg0, %arg2 : i32, i32
  }
  func.func @transform_1(%arg0: i32, %arg1: i32, %arg2: i32) -> (i32, i32) {
    %c0_i32 = arith.constant 0 : i32
    return %arg2, %arg1 : i32, i32
  }
  func.func @transform_2(%arg0: i32, %arg1: i32, %arg2: i32) -> (i32, i32) {
    %c0_i32 = arith.constant 0 : i32
    %c0_i32_0 = arith.constant 0 : i32
    return %c0_i32, %arg1 : i32, i32
  }
  func.func @transform_3(%arg0: i32, %arg1: i32, %arg2: i32) -> (i32, i32) {
    %c0_i32 = arith.constant 0 : i32
    return %arg0, %arg1 : i32, i32
  }
}

</mosaic_0001>

<llo_original>
// kernel: tpu_custom_call.1
$region0: #{tpu_custom_call.1}
  #allocation0 [shape = 'u32[]', space=smem, size = 0x4, offset = 0x4, fixed_abs, tag = 'smem constant byte address 0x4 - core index']
  #allocation1 [shape = 'u32[144,128]{1,0:T(1,128)}', space=vmem, size = 0x12000, scoped, tag = 'internal scratch']
  #allocation2 [shape = 'f32[8,128]{1,0:T(8,128)}', space=vmem, size = 0x1000, scoped, tag = 'scratch operand']
  %s0 = inlined_call_operand.hbm [shape: f32[8,128], index: 0, kind: input, shape index: {}]
  %s1 = inlined_call_operand.hbm [shape: bf16[128,128], index: 1, kind: input, shape index: {}]
  %s2 = inlined_call_operand.vmem [shape: f32[1,128], index: 2, kind: input, shape index: {}]
  %s3 = inlined_call_operand.hbm [shape: f32[8,128], index: 3, kind: output, shape index: {}]
  %s4 = sld [smem:[#allocation0]]
  $region38: #{tpu_custom_call.1} parent=0
    _
  %s6 = ssub.s32 1, %s4
  %s7 = scalar_select 0, %s6, %s4
  $region1: #{tpu_custom_call.1} parent=0
    #allocation3 [shape = 'u8[4096]{0}', space=vmem, size = 0x1000, scoped, tag = 'input window, operand 0, single buffered']
    #allocation4 [shape = 's32[1]{0}', space=sflag, size = 0x4, scoped, tag = 'scoped memory for tpu_custom_call.1']
    #allocation5 [shape = 's32[1]{0}', space=sflag, size = 0x4, scoped, tag = 'scoped memory for tpu_custom_call.1']
    #allocation6 [shape = 'u8[32768]{0}', space=vmem, size = 0x8000, scoped, tag = 'input window, operand 1, single buffered']
    #allocation7 [shape = 's32[1]{0}', space=sflag, size = 0x4, scoped, tag = 'scoped memory for tpu_custom_call.1']
    #allocation8 [shape = 'u8[4096]{0}', space=vmem, size = 0x1000, scoped, tag = 'output window, operand 0, single buffered']
    %8 = vsyncpa [#allocation4], 0
    %9 = vsyncpa [#allocation7], 0
    %10 = vsyncpa [#allocation5], 0
    // Predicated region
    $region2: #{tpu_custom_call.1} parent=1 // pred_check
      _
    $region3: #{tpu_custom_call.1} parent=1 // pred_check_branch
      %12 = sbr.rel (0) target = $region5
    $region4: #{tpu_custom_call.1} parent=1 // pred_region
      %s14 = ssub.s32 128, 128
      %15 = vsyncadd [#allocation4], %s14
      %s17 = sshll.u32 [#allocation3], 4
      %s18 = int_to_ptr.vmem [resolvable:$true] %s17
      %20 = dma.hbm_to_vmem [thread:$0]  %s0, 128, %s18, [#allocation4]
    $region5: #{tpu_custom_call.1} parent=1 // pred_fallthru
      _
    // Predicated region
    $region6: #{tpu_custom_call.1} parent=1 // pred_check
      _
    $region7: #{tpu_custom_call.1} parent=1 // pred_check_branch
      %22 = sbr.rel (0) target = $region9
    $region8: #{tpu_custom_call.1} parent=1 // pred_region
      %s24 = ssub.s32 1024, 1024
      %25 = vsyncadd [#allocation7], %s24
      %s26 = sshll.u32 [#allocation6], 4
      %s27 = int_to_ptr.vmem [resolvable:$true] %s26
      %32 = dma.hbm_to_vmem [thread:$0]  %s1, 1024, %s27, [#allocation7], 64, 64, 4
    $region9: #{tpu_custom_call.1} parent=1 // pred_fallthru
      _
    // Predicated region
    $region10: #{tpu_custom_call.1} parent=1 // pred_check
      _
    $region11: #{tpu_custom_call.1} parent=1 // pred_check_branch
      %34 = sbr.rel (0) target = $region13
    $region12: #{tpu_custom_call.1} parent=1 // pred_region
      _
    $region13: #{tpu_custom_call.1} parent=1 // pred_fallthru
      _
    // Predicated region
    $region14: #{tpu_custom_call.1} parent=1 // pred_check
      _
    $region15: #{tpu_custom_call.1} parent=1 // pred_check_branch
      %36 = sbr.rel (0) target = $region17
    $region16: #{tpu_custom_call.1} parent=1 // pred_region
      %37 = dma.done [#allocation4], 128
    $region17: #{tpu_custom_call.1} parent=1 // pred_fallthru
      _
    // Predicated region
    $region18: #{tpu_custom_call.1} parent=1 // pred_check
      _
    $region19: #{tpu_custom_call.1} parent=1 // pred_check_branch
      %39 = sbr.rel (0) target = $region21
    $region20: #{tpu_custom_call.1} parent=1 // pred_region
      %40 = dma.done [#allocation7], 1024
    $region21: #{tpu_custom_call.1} parent=1 // pred_fallthru
      _
    %p42 = scmp.eq.s32.totalorder 0, 0
    // Predicated region
    $region22: #{tpu_custom_call.1} parent=1 // pred_check
      %p43 = pneg %p42
    $region23: #{tpu_custom_call.1} parent=1 // pred_check_branch
      %45 = sbr.rel (%p43) target = $region25
    $region24: #{tpu_custom_call.1} parent=1 // pred_region
      %46 = vst [vmem:[#allocation2] sm:$0xff] 0.0
    $region25: #{tpu_custom_call.1} parent=1 // pred_fallthru
      _
    %v47 = vld [vmem:[#allocation3] sm:$0xff]
    %v48 = vpack.c.bf16 %v47, %v47
    %v49 = vld [vmem:[#allocation2] sm:$0xff]
    %v50 = vld [vmem:[#allocation6] sm:$0xf]
    %v51 = vld [vmem:[#allocation6 + $0x4] sm:$0xf]
    %v52 = vld [vmem:[#allocation6 + $0x8] sm:$0xf]
    %v53 = vld [vmem:[#allocation6 + $0xc] sm:$0xf]
    %v54 = vld [vmem:[#allocation6 + $0x10] sm:$0xf]
    %v55 = vld [vmem:[#allocation6 + $0x14] sm:$0xf]
    %v56 = vld [vmem:[#allocation6 + $0x18] sm:$0xf]
    %v57 = vld [vmem:[#allocation6 + $0x1c] sm:$0xf]
    %v58 = vld [vmem:[#allocation6 + $0x20] sm:$0xf]
    %v59 = vld [vmem:[#allocation6 + $0x24] sm:$0xf]
    %v60 = vld [vmem:[#allocation6 + $0x28] sm:$0xf]
    %v61 = vld [vmem:[#allocation6 + $0x2c] sm:$0xf]
    %v62 = vld [vmem:[#allocation6 + $0x30] sm:$0xf]
    %v63 = vld [vmem:[#allocation6 + $0x34] sm:$0xf]
    %v64 = vld [vmem:[#allocation6 + $0x38] sm:$0xf]
    %v65 = vld [vmem:[#allocation6 + $0x3c] sm:$0xf]
    %v82 = vunpack.c.l.b16 %v50
    %v83 = vunpack.c.l.b16 %v51
    %v84 = vunpack.c.l.b16 %v52
    %v85 = vunpack.c.l.b16 %v53
    %v86 = vunpack.c.l.b16 %v54
    %v87 = vunpack.c.l.b16 %v55
    %v88 = vunpack.c.l.b16 %v56
    %v89 = vunpack.c.l.b16 %v57
    %v90 = vunpack.c.l.b16 %v58
    %v91 = vunpack.c.l.b16 %v59
    %v92 = vunpack.c.l.b16 %v60
    %v93 = vunpack.c.l.b16 %v61
    %v94 = vunpack.c.l.b16 %v62
    %v95 = vunpack.c.l.b16 %v63
    %v96 = vunpack.c.l.b16 %v64
    %v97 = vunpack.c.l.b16 %v65
    %v98 = vpack.c.b16 %v83, %v82
    %v99 = vpack.c.b16 %v85, %v84
    %v100 = vpack.c.b16 %v87, %v86
    %v101 = vpack.c.b16 %v89, %v88
    %v102 = vpack.c.b16 %v91, %v90
    %v103 = vpack.c.b16 %v93, %v92
    %v104 = vpack.c.b16 %v95, %v94
    %v105 = vpack.c.b16 %v97, %v96
    %114 = vmatprep.subr.bf16.mxu0 0
    %115 = vmatpush1.bf16.msra.mxu0 %v98
    %116 = vmatprep.subr.bf16.mxu0 0
    %117 = vmatpush1.bf16.msra.mxu0 %v99
    %118 = vmatprep.subr.bf16.mxu0 0
    %119 = vmatpush1.bf16.msra.mxu0 %v100
    %120 = vmatprep.subr.bf16.mxu0 0
    %121 = vmatpush1.bf16.msra.mxu0 %v101
    %122 = vmatprep.subr.bf16.mxu0 0
    %123 = vmatpush1.bf16.msra.mxu0 %v102
    %124 = vmatprep.subr.bf16.mxu0 0
    %125 = vmatpush1.bf16.msra.mxu0 %v103
    %126 = vmatprep.subr.bf16.mxu0 0
    %127 = vmatpush1.bf16.msra.mxu0 %v104
    %128 = vmatprep.subr.bf16.mxu0 0
    %129 = vmatpush1.bf16.msra.mxu0 %v105
    %130 = vmatprep.subr.bf16.mxu0 0
    %131 = vmatpush1.bf16.msra.mxu0 0
    %132 = vmatprep.subr.bf16.mxu0 0
    %133 = vmatpush1.bf16.msra.mxu0 0
    %134 = vmatprep.subr.bf16.mxu0 0
    %135 = vmatpush1.bf16.msra.mxu0 0
    %136 = vmatprep.subr.bf16.mxu0 0
    %137 = vmatpush1.bf16.msra.mxu0 0
    %138 = vmatprep.subr.bf16.mxu0 0
    %139 = vmatpush1.bf16.msra.mxu0 0
    %140 = vmatprep.subr.bf16.mxu0 0
    %141 = vmatpush1.bf16.msra.mxu0 0
    %142 = vmatprep.subr.bf16.mxu0 0
    %143 = vmatpush1.bf16.msra.mxu0 0
    %144 = vmatprep.subr.bf16.mxu0 0
    %145 = vmatpush1.bf16.msra.mxu0 0
    %146 = vmatprep.mubr.bf16.mxu0 0
    %147 = vmatmul.mubr.bf16.gmra.mrb[0].mxu0 %v48
    %v148 = vpop.f32.mrb[0].mxu0
    %v149 = vadd.f32 0.0, %v148
    %v150 = vpop.f32.mrb[0].mxu0
    %v151 = vpop.f32.mrb[0].mxu0
    %v152 = vpop.f32.mrb[0].mxu0
    %153 = vdwg.mxu0
    %v154 = vadd.f32 %v49, %v149
    %155 = vst [vmem:[#allocation2] sm:$0xff] %v154
    // Predicated region
    $region26: #{tpu_custom_call.1} parent=1 // pred_check
      %p156 = pneg %p42
    $region27: #{tpu_custom_call.1} parent=1 // pred_check_branch
      %158 = sbr.rel (%p156) target = $region29
    $region28: #{tpu_custom_call.1} parent=1 // pred_region
      %v159 = vld [vmem:[#allocation2] sm:$0xff]
      %v160 = vld [vmem:[%s2] sm:$0x1]
      %v162 = vlaneseq
      %v163 = vshrl.u32 %v162, 7
      %v164 = vsub.s32 0, %v163
      %v165 = vrot.slane %v160, %v164
      %v167 = vadd.f32 %v159, %v165
      %v168 = vtanh.pop %v167
      %169 = vst [vmem:[#allocation8] sm:$0xff] %v168
    $region29: #{tpu_custom_call.1} parent=1 // pred_fallthru
      _
    // Predicated region
    $region30: #{tpu_custom_call.1} parent=1 // pred_check
      _
    $region31: #{tpu_custom_call.1} parent=1 // pred_check_branch
      %171 = sbr.rel (0) target = $region33
    $region32: #{tpu_custom_call.1} parent=1 // pred_region
      %s173 = ssub.s32 128, 128
      %174 = vsyncadd [#allocation5], %s173
      %s176 = sshll.u32 [#allocation8], 4
      %s177 = int_to_ptr.vmem [resolvable:$true] %s176
      %179 = dma.vmem_to_hbm [thread:$0]  %s177, 128, %s3, [#allocation5]
    $region33: #{tpu_custom_call.1} parent=1 // pred_fallthru
      _
    // Predicated region
    $region34: #{tpu_custom_call.1} parent=1 // pred_check
      _
    $region35: #{tpu_custom_call.1} parent=1 // pred_check_branch
      %181 = sbr.rel (0) target = $region37
    $region36: #{tpu_custom_call.1} parent=1 // pred_region
      %182 = dma.done [#allocation5], 128
    $region37: #{tpu_custom_call.1} parent=1 // pred_fallthru
      _
    %183 = vsyncpa [#allocation4], 1
    %184 = vsyncpa [#allocation7], 1
    %185 = vsyncpa [#allocation5], 1

</llo_original>
